<compile_context>
chip_gen: v5e
topology: v5e:2x2
jax: 0.10.0
libtpu: 0.0.40
codegen_flags: <defaults>
</compile_context>

<pallas_src>
import functools

import jax
import jax.numpy as jnp
from jax.experimental import pallas as pl
from jax.experimental.pallas import tpu as pltpu

EMB_COE = 1.0        # self.emb_coe = 1 in the reference module
LANE = 128           # lane width of a vreg
SUBLANE = 8          # f32 sublanes per vreg
SENTINEL = 1.0e7     # padded-landmark coordinate: exp(-sqrt(2)*1e7) == 0.0 in f32


def _round_up(x, m):
    return (x + m - 1) // m * m


def _pos_emb2_kernel(nodes_ref, lmx_ref, lmy_ref, out_ref):
    # nodes_ref: (TB, 2)  f32 -- query nodes, batch on sublanes
    # lmx_ref  : (1, Lp)  f32 -- landmark x coords, lane-dense, sentinel-padded
    # lmy_ref  : (1, Lp)  f32 -- landmark y coords, lane-dense, sentinel-padded
    # out_ref  : (TB, L)  f32 -- normalized embedding (L = true landmark count)
    l_out = out_ref.shape[1]

    nx = nodes_ref[:, 0:1]                 # (TB, 1)
    ny = nodes_ref[:, 1:2]                 # (TB, 1)
    lmx = lmx_ref[...]                     # (1, Lp)
    lmy = lmy_ref[...]                     # (1, Lp)

    # Pure VPU elementwise math; no cross-sublane reduction needed.
    dx = nx - lmx                          # (TB, Lp)
    dy = ny - lmy                          # (TB, Lp)
    dis = jnp.sqrt(dx * dx + dy * dy)      # (TB, Lp)
    emb = jnp.exp(dis * (-EMB_COE))        # (TB, Lp); sentinel lanes -> exactly 0.0

    denom = jnp.sum(emb, axis=-1, keepdims=True)   # (TB, 1) cross-lane reduce
    # EUP approximate reciprocal + one Newton step -> full f32 precision.
    r = pl.reciprocal(denom, approx=True)
    r = r * (2.0 - denom * r)

    out_ref[...] = (emb * r)[:, :l_out]    # drop padded landmark lanes at the store


class PosEmb2:
    """Pallas TPU equivalent of Pos_Emb2.

    Landmarks (loaded from landmark.npy in the original module) are
    preprocessed once at construction: cast to f32, split into coordinate-major
    lane-dense (1, Lp) rows, and padded to a multiple of 128 lanes with a 1e7
    sentinel so padded lanes vanish from the softmax-style normalization.
    """

    # TODO(synk): the original module reads args.data_root + '/landmark.npy';
    # file I/O is replaced by an in-memory landmark array passed to __init__.
    def __init__(self, landmarks, emb_coe=1.0, tb_max=2048):
        assert emb_coe == EMB_COE  # reference hard-codes emb_coe = 1
        landmarks = jnp.asarray(landmarks, jnp.float32)          # (L, 2)
        self.n_landmarks = int(landmarks.shape[0])
        lp = _round_up(self.n_landmarks, LANE)
        lm_pad = jnp.full((lp, 2), SENTINEL, jnp.float32).at[: self.n_landmarks].set(landmarks)
        self.lm_x = lm_pad[:, 0].reshape(1, lp)                  # lane-dense x row
        self.lm_y = lm_pad[:, 1].reshape(1, lp)                  # lane-dense y row
        self._lp = lp
        self._tb_max = int(tb_max)
        self._fwd = jax.jit(self._forward_impl)

    def _forward_impl(self, node, lm_x, lm_y):
        single = node.ndim == 1
        nodes = node.reshape(1, 2) if single else node           # (B, 2)
        b = nodes.shape[0]

        tb = min(_round_up(b, SUBLANE), self._tb_max)            # batch tile (mult of 8)
        bp = _round_up(b, tb)
        if bp != b:
            nodes = jnp.pad(nodes, ((0, bp - b), (0, 0)))        # fused inside the jit

        lp = self._lp
        n_l = self.n_landmarks
        out = pl.pallas_call(
            _pos_emb2_kernel,
            out_shape=jax.ShapeDtypeStruct((bp, n_l), jnp.float32),
            grid=(bp // tb,),
            in_specs=[
                pl.BlockSpec((tb, 2), lambda i: (i, 0)),         # nodes tile
                pl.BlockSpec((1, lp), lambda i: (0, 0)),         # landmark x (resident)
                pl.BlockSpec((1, lp), lambda i: (0, 0)),         # landmark y (resident)
            ],
            out_specs=pl.BlockSpec((tb, n_l), lambda i: (i, 0)),
            compiler_params=pltpu.CompilerParams(
                dimension_semantics=("parallel",)),
        )(nodes, lm_x, lm_y)

        if bp != b:
            out = out[:b]
        return out[0] if single else out

    def __call__(self, node):
        """node: (2,) or (B, 2) float32 -> (L,) or (B, L) float32."""
        node = jnp.asarray(node, jnp.float32)
        return self._fwd(node, self.lm_x, self.lm_y)


# ------------------------- pure-JAX references -------------------------

def pos_emb2_ref_single(node, landmarks):
    diff = node[None, :] - landmarks                        # (L, 2)
    dis = jnp.sqrt(diff[:, 0] ** 2 + diff[:, 1] ** 2)       # (L,)
    emb = jnp.exp(dis * -EMB_COE)
    return emb / jnp.sum(emb)


def pos_emb2_ref_batched(nodes, landmarks):
    diff = nodes[:, None, :] - landmarks[None, :, :]        # (B, L, 2)
    dis = jnp.sqrt(jnp.sum(diff * diff, axis=-1))           # (B, L)
    emb = jnp.exp(dis * -EMB_COE)
    return emb / jnp.sum(emb, axis=-1, keepdims=True)


if __name__ == "__main__":
    key = jax.random.PRNGKey(0)
    k_lm, k_node, k_big = jax.random.split(key, 3)

    # Synthetic stand-in for landmark.npy; deliberately NOT multiples of 128 / 8
    # to exercise the lane/sublane padding + sentinel-masking paths.
    L = 100   # number of landmarks
    B = 5     # batch of query nodes
    landmarks = jax.random.uniform(k_lm, (L, 2), dtype=jnp.float32, minval=-5.0, maxval=5.0)
    nodes = jax.random.uniform(k_node, (B, 2), dtype=jnp.float32, minval=-5.0, maxval=5.0)

    pos_emb = PosEmb2(landmarks)

    # Batched path (amortizes per-call overhead across queries).
    out_b = jax.block_until_ready(pos_emb(nodes))            # (B, L)
    ref_b = pos_emb2_ref_batched(nodes, landmarks)
    assert out_b.shape == (B, L)
    assert jnp.allclose(out_b, ref_b, atol=1e-6, rtol=1e-5), "batched mismatch vs reference"
    assert jnp.allclose(jnp.sum(out_b, axis=-1), jnp.ones((B,)), atol=1e-5), "normalization broken"

    # Single-query path (matches the original module's forward(node) signature).
    out_1 = jax.block_until_ready(pos_emb(nodes[0]))         # (L,)
    ref_1 = pos_emb2_ref_single(nodes[0], landmarks)
    assert out_1.shape == (L,)
    assert jnp.allclose(out_1, ref_1, atol=1e-6, rtol=1e-5), "single mismatch vs reference"
    assert jnp.allclose(jnp.sum(out_1), 1.0, atol=1e-5), "normalization broken"

    # Multi-tile grid path: small TB cap so the batch spans several grid steps
    # (exercises pipelining, batch padding, and the residual row slice).
    pos_emb_tiled = PosEmb2(landmarks, tb_max=64)
    B_big = 200
    nodes_big = jax.random.uniform(k_big, (B_big, 2), dtype=jnp.float32, minval=-5.0, maxval=5.0)
    out_big = jax.block_until_ready(pos_emb_tiled(nodes_big))  # (200, L), grid=(4,)
    ref_big = pos_emb2_ref_batched(nodes_big, landmarks)
    assert out_big.shape == (B_big, L)
    assert jnp.allclose(out_big, ref_big, atol=1e-6, rtol=1e-5), "tiled mismatch vs reference"

    print("KERNEL_OK")
</pallas_src>

<mosaic_0001>
module attributes {stable_mosaic.version = 11 : i64} {
  func.func @_pos_emb2_kernel(%arg0: i32, %arg1: memref<8x2xf32, #tpu.memory_space<vmem>>, %arg2: memref<1x128xf32, #tpu.memory_space<vmem>>, %arg3: memref<1x128xf32, #tpu.memory_space<vmem>>, %arg4: memref<8x100xf32, #tpu.memory_space<vmem>>) attributes {dimension_semantics = [#tpu.dimension_semantics<parallel>], iteration_bounds = array<i64: 1>, scalar_prefetch = 0 : i64, scratch_operands = 0 : i64, tpu.core_type = #tpu.core_type<tc>, window_params = [{transform_indices = @transform_0, window_bounds = array<i64: 8, 2>}, {pipeline_mode = #tpu.pipeline_mode<synchronous>, transform_indices = @transform_1, window_bounds = array<i64: 1, 128>}, {pipeline_mode = #tpu.pipeline_mode<synchronous>, transform_indices = @transform_2, window_bounds = array<i64: 1, 128>}, {transform_indices = @transform_3, window_bounds = array<i64: 8, 100>}]} {
    %c0 = arith.constant 0 : index
    %c0_0 = arith.constant 0 : index
    %0 = vector.load %arg1[%c0, %c0_0] : memref<8x2xf32, #tpu.memory_space<vmem>>, vector<8x1xf32>
    %c0_1 = arith.constant 0 : index
    %c1 = arith.constant 1 : index
    %1 = vector.load %arg1[%c0_1, %c1] : memref<8x2xf32, #tpu.memory_space<vmem>>, vector<8x1xf32>
    %c0_2 = arith.constant 0 : index
    %c0_3 = arith.constant 0 : index
    %2 = vector.load %arg2[%c0_2, %c0_3] : memref<1x128xf32, #tpu.memory_space<vmem>>, vector<1x128xf32>
    %c0_4 = arith.constant 0 : index
    %c0_5 = arith.constant 0 : index
    %3 = vector.load %arg3[%c0_4, %c0_5] : memref<1x128xf32, #tpu.memory_space<vmem>>, vector<1x128xf32>
    %4 = vector.broadcast %0 : vector<8x1xf32> to vector<8x128xf32>
    %5 = vector.broadcast %2 : vector<1x128xf32> to vector<8x128xf32>
    %6 = arith.subf %4, %5 : vector<8x128xf32>
    %7 = vector.broadcast %1 : vector<8x1xf32> to vector<8x128xf32>
    %8 = vector.broadcast %3 : vector<1x128xf32> to vector<8x128xf32>
    %9 = arith.subf %7, %8 : vector<8x128xf32>
    %10 = arith.mulf %6, %6 : vector<8x128xf32>
    %11 = arith.mulf %9, %9 : vector<8x128xf32>
    %12 = arith.addf %10, %11 : vector<8x128xf32>
    %13 = math.sqrt %12 : vector<8x128xf32>
    %cst = arith.constant -1.000000e+00 : f32
    %14 = vector.broadcast %cst : f32 to vector<8x128xf32>
    %15 = arith.mulf %13, %14 : vector<8x128xf32>
    %16 = math.exp %15 : vector<8x128xf32>
    %cst_6 = arith.constant dense<0.000000e+00> : vector<8xf32>
    %17 = vector.multi_reduction <add>, %16, %cst_6 [1] : vector<8x128xf32> to vector<8xf32>
    %18 = vector.shape_cast %17 : vector<8xf32> to vector<8x1xf32>
    %19 = tpu.reciprocal %18 {approx = true} : vector<8x1xf32> -> vector<8x1xf32>
    %20 = arith.mulf %18, %19 : vector<8x1xf32>
    %cst_7 = arith.constant 2.000000e+00 : f32
    %21 = vector.broadcast %cst_7 : f32 to vector<8x1xf32>
    %22 = arith.subf %21, %20 : vector<8x1xf32>
    %23 = arith.mulf %19, %22 : vector<8x1xf32>
    %24 = vector.broadcast %23 : vector<8x1xf32> to vector<8x128xf32>
    %25 = arith.mulf %16, %24 : vector<8x128xf32>
    %26 = vector.extract_strided_slice %25 {offsets = [0, 0], sizes = [8, 100], strides = [1, 1]} : vector<8x128xf32> to vector<8x100xf32>
    %c0_8 = arith.constant 0 : index
    %c0_9 = arith.constant 0 : index
    %27 = vector.load %arg4[%c0_8, %c0_9] : memref<8x100xf32, #tpu.memory_space<vmem>>, vector<8x100xf32>
    tpu.vector_store %arg4[%c0_8, %c0_9], %26 {strides = array<i32>} : memref<8x100xf32, #tpu.memory_space<vmem>>, vector<8x100xf32>,
    return
  }
  func.func @transform_0(%arg0: i32) -> (i32, i32) {
    %c0_i32 = arith.constant 0 : i32
    %c0_i32_0 = arith.constant 0 : i32
    return %arg0, %c0_i32 : i32, i32
  }
  func.func @transform_1(%arg0: i32) -> (i32, i32) {
    %c0_i32 = arith.constant 0 : i32
    %c0_i32_0 = arith.constant 0 : i32
    %c0_i32_1 = arith.constant 0 : i32
    return %c0_i32, %c0_i32_0 : i32, i32
  }
  func.func @transform_2(%arg0: i32) -> (i32, i32) {
    %c0_i32 = arith.constant 0 : i32
    %c0_i32_0 = arith.constant 0 : i32
    %c0_i32_1 = arith.constant 0 : i32
    return %c0_i32, %c0_i32_0 : i32, i32
  }
  func.func @transform_3(%arg0: i32) -> (i32, i32) {
    %c0_i32 = arith.constant 0 : i32
    %c0_i32_0 = arith.constant 0 : i32
    return %arg0, %c0_i32 : i32, i32
  }
}

</mosaic_0001>

<llo_original>
// kernel: _forward_impl.1
$region0: #{_forward_impl.1}
  #allocation0 [shape = 'u32[]', space=smem, size = 0x4, offset = 0x4, fixed_abs, tag = 'smem constant byte address 0x4 - core index']
  #allocation1 [shape = 'u32[72,128]{1,0:T(1,128)}', space=vmem, size = 0x9000, scoped, tag = 'internal scratch']
  %s0 = inlined_call_operand.vmem [shape: f32[8,2], index: 0, kind: input, shape index: {}]
  %s1 = inlined_call_operand.vmem [shape: f32[1,128], index: 1, kind: input, shape index: {}]
  %s2 = inlined_call_operand.vmem [shape: f32[1,128], index: 2, kind: input, shape index: {}]
  %s3 = inlined_call_operand.hbm [shape: f32[8,100], index: 3, kind: output, shape index: {}]
  %s4 = sld [smem:[#allocation0]]
  $region22: #{_forward_impl.1} parent=0
    _
  %s6 = ssub.s32 1, %s4
  %s7 = scalar_select 0, %s6, %s4
  $region1: #{_forward_impl.1} parent=0
    #allocation2 [shape = 'u8[4096]{0}', space=vmem, size = 0x1000, scoped, tag = 'output window, operand 0, single buffered']
    #allocation3 [shape = 's32[1]{0}', space=sflag, size = 0x4, scoped, tag = 'scoped memory for _forward_impl.1']
    %8 = vsyncpa [#allocation3], 0
    // Predicated region
    $region2: #{_forward_impl.1} parent=1 // pred_check
      _
    $region3: #{_forward_impl.1} parent=1 // pred_check_branch
      %10 = sbr.rel (0) target = $region5
    $region4: #{_forward_impl.1} parent=1 // pred_region
      _
    $region5: #{_forward_impl.1} parent=1 // pred_fallthru
      _
    // Predicated region
    $region6: #{_forward_impl.1} parent=1 // pred_check
      _
    $region7: #{_forward_impl.1} parent=1 // pred_check_branch
      %12 = sbr.rel (0) target = $region9
    $region8: #{_forward_impl.1} parent=1 // pred_region
      _
    $region9: #{_forward_impl.1} parent=1 // pred_fallthru
      _
    // Predicated region
    $region10: #{_forward_impl.1} parent=1 // pred_check
      _
    $region11: #{_forward_impl.1} parent=1 // pred_check_branch
      %14 = sbr.rel (0) target = $region13
    $region12: #{_forward_impl.1} parent=1 // pred_region
      _
    $region13: #{_forward_impl.1} parent=1 // pred_fallthru
      _
    %v15 = vld [vmem:[%s0] sm:$0xff]
    %v16 = vld [vmem:[%s1] sm:$0x1]
    %v17 = vld [vmem:[%s2] sm:$0x1]
    %19 = vset.pattern.permute.xlu0 0
    %20 = vperm.xlu0 %19, %v15
    %v21 = vpop.permute.xlu0 %20
    %v24 = vperm.slane %v16, 0
    %v26 = vsub.f32 %v21, %v24
    %27 = vset.pattern.permute.xlu0 1
    %28 = vperm.xlu0 %27, %v15
    %v29 = vpop.permute.xlu0 %28
    %v32 = vperm.slane %v17, 0
    %v34 = vsub.f32 %v29, %v32
    %v35 = vmul.f32 %v26, %v26
    %v36 = vmul.f32 %v34, %v34
    %v37 = vadd.f32 %v35, %v36
    %v38 = vrsqrt.pop %v37
    %v39 = vmul.f32 %v38, %v37
    %v40 = vmul.f32 %v39, %v38
    %v41 = vmul.f32 0.5, %v40
    %v42 = vsub.f32 1.5, %v41
    %v43 = vmul.f32 %v38, %v42
    %v44 = vmul.f32 %v37, %v43
    %vm45 = vcmp.eq.f32.partialorder %v37, inf
    %v46 = vsel %vm45, %v37, %v44
    %vm47 = vcmp.eq.f32.partialorder %v37, 0.0
    %v48 = vand.u32 %v37, 2147483648
    %v49 = vsel %vm47, %v48, %v46
    %v50 = vmul.f32 %v49, -1.0
    %v51 = vmul.f32 %v50, 1.442695
    %v52 = vpow.pop %v51
    %53 = vadd.xlane.f32.xlu0 %v52
    %v54 = vpop.xlane.xlu0 %53
    %v55 = vrcp.pop %v54
    %v56 = vmul.f32 %v54, %v55
    %v57 = vsub.f32 2.0, %v56
    %v58 = vmul.f32 %v55, %v57
    %v59 = vmul.f32 %v52, %v58
    %vm60 = vcmask 818176
    %61 = vst.msk [vmem:[#allocation2] sm:$0xff] %vm60, %v59
    // Predicated region
    $region14: #{_forward_impl.1} parent=1 // pred_check
      _
    $region15: #{_forward_impl.1} parent=1 // pred_check_branch
      %63 = sbr.rel (0) target = $region17
    $region16: #{_forward_impl.1} parent=1 // pred_region
      %65 = vsyncadd [#allocation3], 0
      %s67 = sshll.u32 [#allocation2], 4
      %s68 = int_to_ptr.vmem [resolvable:$true] %s67
      %s69 = sshll.u32 %s3, 4
      %s70 = int_to_ptr.hbm [resolvable:$true] %s69
      %72 = dma.vmem_to_hbm [thread:$0]  %s68, 128, %s70, [#allocation3]
    $region17: #{_forward_impl.1} parent=1 // pred_fallthru
      _
    // Predicated region
    $region18: #{_forward_impl.1} parent=1 // pred_check
      _
    $region19: #{_forward_impl.1} parent=1 // pred_check_branch
      %74 = sbr.rel (0) target = $region21
    $region20: #{_forward_impl.1} parent=1 // pred_region
      %76 = dma.done [#allocation3], 128
    $region21: #{_forward_impl.1} parent=1 // pred_fallthru
      _
    %77 = vsyncpa [#allocation3], 1

</llo_original>
